<compile_context>
chip_gen: v7x
topology: tpu7x:2x2x1
jax: 0.10.0
libtpu: 0.0.40
codegen_flags: <defaults>
</compile_context>

<pallas_src>
import functools

import jax
import jax.numpy as jnp
from jax.experimental import pallas as pl
from jax.experimental.pallas import tpu as pltpu

_TILE_ROWS = 1024          # 1024 x 128 x 4 B = 512 KiB per f32 input block
_FAST_PATH_MAX = 65536     # below this, XLA fusion beats kernel fixed cost


def _round_up(x, m):
    return ((x + m - 1) // m) * m


def _fold_rows_to_vreg(x):
    """(R, 128) -> (8, 128) by summing groups of 8 sublanes.  Requires R % 8 == 0.

    Each (8, 128) f32 slice is one native vreg tile, so this lowers to plain
    VALU adds (no XLU / cross-lane traffic in the hot loop)."""
    r = x.shape[0]
    acc = x[0:8, :]
    for g in range(1, r // 8):
        acc = acc + x[g * 8:(g + 1) * 8, :]
    return acc


def _kld_mvnx2_kernel(mq_ref, sq_ref, mp_ref, sp_ref, out_ref, acc_ref, *,
                      n_valid, tile_rows, steps_per_core, total_steps):
    core = pl.program_id(0)
    step = pl.program_id(1)

    @pl.when(step == 0)
    def _init():
        acc_ref[...] = jnp.zeros_like(acc_ref)

    # Cast to f32 inside the kernel (inputs may arrive as bf16 over HBM).
    mq = mq_ref[...].astype(jnp.float32)
    sq = sq_ref[...].astype(jnp.float32)
    mp = mp_ref[...].astype(jnp.float32)
    sp = sp_ref[...].astype(jnp.float32)

    d = mq - mp
    # Per-element KL contribution; "-1" per element instead of -0.5*n at the end.
    c = 0.5 * ((sq - sp) + (jnp.exp(sp - sq) - 1.0) + d * d * jnp.exp(-sq))

    # Mask everything past the logical end of the vectors: remainder of the last
    # 128-lane row, unspecified data in ragged-edge block padding, and the
    # clamped fully-out-of-range steps of the second core.
    global_step = core * steps_per_core + step
    base = global_step * (tile_rows * 128)
    flat = (base
            + jax.lax.broadcasted_iota(jnp.int32, (tile_rows, 128), 0) * 128
            + jax.lax.broadcasted_iota(jnp.int32, (tile_rows, 128), 1))
    valid = jnp.logical_and(global_step < total_steps, flat < n_valid)
    c = jnp.where(valid, c, 0.0)

    # Pure-VALU accumulation into the (8, 128) scratch.
    acc_ref[...] += _fold_rows_to_vreg(c)

    # Single store per core at its last step; final reduction is in the wrapper.
    @pl.when(step == pl.num_programs(1) - 1)
    def _finalize():
        out_ref[...] = acc_ref[...]


def _kld_mvnx2_pallas(mu_q, sigma_q, mu_p, sigma_p, *, tile_rows_max=_TILE_ROWS):
    n = mu_q.shape[0]
    # Row alignment so blocks never exceed the array along sublanes and stay
    # layout-friendly for narrow dtypes (8 rows f32, 16 rows bf16, 32 int8).
    row_align = max(
        8 * max(1, 4 // jnp.dtype(a.dtype).itemsize)
        for a in (mu_q, sigma_q, mu_p, sigma_p))
    rows = _round_up(pl.cdiv(n, 128), row_align)
    n_store = rows * 128

    def _rowsify(a):
        if a.shape[0] != n_store:
            a = jnp.pad(a, (0, n_store - a.shape[0]))   # exact zeros, only if ragged
        return a.reshape(rows, 128)                     # free when n % (row_align*128) == 0

    mq2, sq2, mp2, sp2 = (_rowsify(a) for a in (mu_q, sigma_q, mu_p, sigma_p))

    tile_rows = min(_round_up(tile_rows_max, row_align), rows)
    total_steps = pl.cdiv(rows, tile_rows)
    cores = 2 if total_steps >= 2 else 1         # split rows across v7x's 2 TCs
    steps_per_core = pl.cdiv(total_steps, cores)

    def in_map(c, i):
        # Clamp the (possibly) out-of-range trailing step of the second core;
        # its contribution is zeroed by the in-kernel step mask.
        s = jnp.minimum(c * steps_per_core + i, total_steps - 1)
        return (s, 0)

    in_spec = pl.BlockSpec((tile_rows, 128), in_map)

    kernel = functools.partial(
        _kld_mvnx2_kernel, n_valid=n, tile_rows=tile_rows,
        steps_per_core=steps_per_core, total_steps=total_steps)

    bytes_in = sum(int(jnp.dtype(a.dtype).itemsize) * n
                   for a in (mu_q, sigma_q, mu_p, sigma_p))
    partials = pl.pallas_call(
        kernel,
        out_shape=jax.ShapeDtypeStruct((cores, 8, 128), jnp.float32),
        grid=(cores, steps_per_core),
        in_specs=[in_spec, in_spec, in_spec, in_spec],
        out_specs=pl.BlockSpec((None, 8, 128), lambda c, i: (c, 0, 0)),
        scratch_shapes=[pltpu.VMEM((8, 128), jnp.float32)],
        compiler_params=pltpu.CompilerParams(
            dimension_semantics=("parallel", "arbitrary")),
        cost_estimate=pl.CostEstimate(
            flops=10 * n, transcendentals=2 * n,
            bytes_accessed=bytes_in + cores * 8 * 128 * 4),
    )(mq2, sq2, mp2, sp2)

    return jnp.sum(partials)   # tiny final reduce over (cores, 8, 128) partials


def kld_mvnx2_ref(mu_q, sigma_q, mu_p, sigma_p):
    """Pure-JAX reference mirroring the literal torch math (diag covariances)."""
    n = mu_q.shape[0]
    mu_q = jnp.asarray(mu_q, jnp.float32)
    sigma_q = jnp.asarray(sigma_q, jnp.float32)
    mu_p = jnp.asarray(mu_p, jnp.float32)
    sigma_p = jnp.asarray(sigma_p, jnp.float32)
    half_term1 = 0.5 * (jnp.sum(sigma_q) - jnp.sum(sigma_p))
    term2 = jnp.sum(jnp.exp(sigma_p - sigma_q))
    term3 = jnp.sum((mu_q - mu_p) ** 2 * jnp.exp(-sigma_q))
    return half_term1 + 0.5 * (term2 + term3 - n)


def kld_mvnx2(mu_q, sigma_q, mu_p, sigma_p, *, force_pallas=False):
    """KL( N(mu_q, diag(exp(sigma_q))) || N(mu_p, diag(exp(sigma_p))) )."""
    if mu_p.shape[0] != mu_q.shape[0]:
        raise ValueError(
            "KL-divergence between two Multivariate Normals with "
            "different event shapes cannot be computed")
    n = mu_q.shape[0]
    if n < _FAST_PATH_MAX and not force_pallas:
        # Launch + single-DMA fixed cost dominates for tiny n; let XLA fuse.
        return kld_mvnx2_ref(mu_q, sigma_q, mu_p, sigma_p)
    # TODO(synk): add a batched entry point (extra grid axis marked "parallel")
    # if many (mu_q, sigma_q, mu_p, sigma_p) tuples are evaluated repeatedly.
    return _kld_mvnx2_pallas(mu_q, sigma_q, mu_p, sigma_p)


if __name__ == "__main__":
    key = jax.random.PRNGKey(0)

    def make_inputs(subkey, n, dtype=jnp.float32):
        k1, k2, k3, k4 = jax.random.split(subkey, 4)
        mu_q = jax.random.normal(k1, (n,), jnp.float32).astype(dtype)
        sigma_q = (0.5 * jax.random.normal(k2, (n,), jnp.float32)).astype(dtype)
        mu_p = jax.random.normal(k3, (n,), jnp.float32).astype(dtype)
        sigma_p = (0.5 * jax.random.normal(k4, (n,), jnp.float32)).astype(dtype)
        return mu_q, sigma_q, mu_p, sigma_p

    k_a, k_b, k_c = jax.random.split(key, 3)

    # Case 1: tiny n -> automatic pure-JAX fast path.
    args = make_inputs(k_a, 200)
    kl_ref = kld_mvnx2_ref(*args)
    kl = kld_mvnx2(*args)
    jax.block_until_ready(kl)
    assert jnp.allclose(kl, kl_ref, rtol=1e-4, atol=1e-4), (kl, kl_ref)

    # Case 2: same tiny n forced through the Pallas path (pad + lane mask).
    kl = kld_mvnx2(*args, force_pallas=True)
    jax.block_until_ready(kl)
    assert jnp.allclose(kl, kl_ref, rtol=1e-4, atol=1e-4), (kl, kl_ref)

    # Case 3: n a multiple of 1024 -> zero-copy reshape, single full block.
    args = make_inputs(k_b, 4096)
    kl_ref = kld_mvnx2_ref(*args)
    kl = kld_mvnx2(*args, force_pallas=True)
    jax.block_until_ready(kl)
    assert jnp.allclose(kl, kl_ref, rtol=1e-4, atol=1e-4), (kl, kl_ref)

    # Case 4: bf16 inputs, multi-step grid, 2-way "parallel" core split with a
    # clamped out-of-range trailing step (small tile_rows_max just for testing).
    args = make_inputs(k_c, 4700, dtype=jnp.bfloat16)
    kl_ref = kld_mvnx2_ref(*args)
    kl = _kld_mvnx2_pallas(*args, tile_rows_max=16)
    jax.block_until_ready(kl)
    assert jnp.allclose(kl, kl_ref, rtol=1e-4, atol=1e-3), (kl, kl_ref)

    print("KERNEL_OK")
</pallas_src>

<mosaic_0001>
module attributes {stable_mosaic.version = 11 : i64} {
  func.func @_kld_mvnx2_kernel(%arg0: i32, %arg1: i32, %arg2: memref<8x128xf32, #tpu.memory_space<vmem>>, %arg3: memref<8x128xf32, #tpu.memory_space<vmem>>, %arg4: memref<8x128xf32, #tpu.memory_space<vmem>>, %arg5: memref<8x128xf32, #tpu.memory_space<vmem>>, %arg6: memref<1x8x128xf32, #tpu.memory_space<vmem>>, %arg7: memref<8x128xf32, #tpu.memory_space<vmem>>) attributes {dimension_semantics = [#tpu.dimension_semantics<parallel>, #tpu.dimension_semantics<arbitrary>], iteration_bounds = array<i64: 1, 1>, scalar_prefetch = 0 : i64, scratch_operands = 1 : i64, tpu.core_type = #tpu.core_type<tc>, window_params = [{transform_indices = @transform_0, window_bounds = array<i64: 8, 128>}, {transform_indices = @transform_1, window_bounds = array<i64: 8, 128>}, {transform_indices = @transform_2, window_bounds = array<i64: 8, 128>}, {transform_indices = @transform_3, window_bounds = array<i64: 8, 128>}, {transform_indices = @transform_4, window_bounds = array<i64: 1, 8, 128>}]} {
    %c0_i32 = arith.constant 0 : i32
    %0 = arith.cmpi eq, %arg1, %c0_i32 : i32
    %1 = arith.extui %0 : i1 to i32
    %c0_i32_0 = arith.constant 0 : i32
    %2 = arith.cmpi ne, %1, %c0_i32_0 : i32
    scf.if %2 {
      %cst_18 = arith.constant 0.000000e+00 : f32
      %45 = vector.broadcast %cst_18 : f32 to vector<8x128xf32>
      %c0_19 = arith.constant 0 : index
      %c0_20 = arith.constant 0 : index
      %46 = vector.load %arg7[%c0_19, %c0_20] : memref<8x128xf32, #tpu.memory_space<vmem>>, vector<8x128xf32>
      tpu.vector_store %arg7[%c0_19, %c0_20], %45 {strides = array<i32>} : memref<8x128xf32, #tpu.memory_space<vmem>>, vector<8x128xf32>,
    } else {
    }
    %c0 = arith.constant 0 : index
    %c0_1 = arith.constant 0 : index
    %3 = vector.load %arg2[%c0, %c0_1] : memref<8x128xf32, #tpu.memory_space<vmem>>, vector<8x128xf32>
    %c0_2 = arith.constant 0 : index
    %c0_3 = arith.constant 0 : index
    %4 = vector.load %arg3[%c0_2, %c0_3] : memref<8x128xf32, #tpu.memory_space<vmem>>, vector<8x128xf32>
    %c0_4 = arith.constant 0 : index
    %c0_5 = arith.constant 0 : index
    %5 = vector.load %arg4[%c0_4, %c0_5] : memref<8x128xf32, #tpu.memory_space<vmem>>, vector<8x128xf32>
    %c0_6 = arith.constant 0 : index
    %c0_7 = arith.constant 0 : index
    %6 = vector.load %arg5[%c0_6, %c0_7] : memref<8x128xf32, #tpu.memory_space<vmem>>, vector<8x128xf32>
    %7 = arith.subf %3, %5 : vector<8x128xf32>
    %8 = arith.subf %4, %6 : vector<8x128xf32>
    %9 = arith.subf %6, %4 : vector<8x128xf32>
    %10 = math.exp %9 : vector<8x128xf32>
    %cst = arith.constant 1.000000e+00 : f32
    %11 = vector.broadcast %cst : f32 to vector<8x128xf32>
    %12 = arith.subf %10, %11 : vector<8x128xf32>
    %13 = arith.addf %8, %12 : vector<8x128xf32>
    %14 = arith.mulf %7, %7 : vector<8x128xf32>
    %cst_8 = arith.constant 0.000000e+00 : f32
    %15 = vector.broadcast %cst_8 : f32 to vector<8x128xf32>
    %16 = arith.subf %15, %4 : vector<8x128xf32>
    %17 = math.exp %16 : vector<8x128xf32>
    %18 = arith.mulf %14, %17 : vector<8x128xf32>
    %19 = arith.addf %13, %18 : vector<8x128xf32>
    %cst_9 = arith.constant 5.000000e-01 : f32
    %20 = vector.broadcast %cst_9 : f32 to vector<8x128xf32>
    %21 = arith.mulf %20, %19 : vector<8x128xf32>
    %c1_i32 = arith.constant 1 : i32
    %22 = arith.muli %arg0, %c1_i32 : i32
    %23 = arith.addi %22, %arg1 : i32
    %c1024_i32 = arith.constant 1024 : i32
    %24 = arith.muli %23, %c1024_i32 : i32
    %25 = tpu.iota {dimensions = array<i32: 0>} : vector<8x128xi32>
    %c128_i32 = arith.constant 128 : i32
    %26 = vector.broadcast %c128_i32 : i32 to vector<8x128xi32>
    %27 = arith.muli %25, %26 : vector<8x128xi32>
    %28 = vector.broadcast %24 : i32 to vector<8x128xi32>
    %29 = arith.addi %28, %27 : vector<8x128xi32>
    %30 = tpu.iota {dimensions = array<i32: 1>} : vector<8x128xi32>
    %31 = arith.addi %29, %30 : vector<8x128xi32>
    %c1_i32_10 = arith.constant 1 : i32
    %32 = arith.cmpi slt, %23, %c1_i32_10 : i32
    %c200_i32 = arith.constant 200 : i32
    %33 = vector.broadcast %c200_i32 : i32 to vector<8x128xi32>
    %34 = arith.cmpi slt, %31, %33 : vector<8x128xi32>
    %35 = vector.broadcast %32 : i1 to vector<8x128xi1>
    %36 = arith.andi %35, %34 : vector<8x128xi1>
    %cst_11 = arith.constant 0.000000e+00 : f32
    %37 = vector.broadcast %cst_11 : f32 to vector<8x128xf32>
    %38 = arith.select %36, %21, %37 : vector<8x128xi1>, vector<8x128xf32>
    %c0_12 = arith.constant 0 : index
    %c0_13 = arith.constant 0 : index
    %39 = vector.load %arg7[%c0_12, %c0_13] : memref<8x128xf32, #tpu.memory_space<vmem>>, vector<8x128xf32>
    %40 = arith.addf %39, %38 : vector<8x128xf32>
    %c0_14 = arith.constant 0 : index
    %c0_15 = arith.constant 0 : index
    %41 = vector.load %arg7[%c0_14, %c0_15] : memref<8x128xf32, #tpu.memory_space<vmem>>, vector<8x128xf32>
    tpu.vector_store %arg7[%c0_14, %c0_15], %40 {strides = array<i32>} : memref<8x128xf32, #tpu.memory_space<vmem>>, vector<8x128xf32>,
    %c0_i32_16 = arith.constant 0 : i32
    %42 = arith.cmpi eq, %arg1, %c0_i32_16 : i32
    %43 = arith.extui %42 : i1 to i32
    %c0_i32_17 = arith.constant 0 : i32
    %44 = arith.cmpi ne, %43, %c0_i32_17 : i32
    scf.if %44 {
      %c0_18 = arith.constant 0 : index
      %c0_19 = arith.constant 0 : index
      %45 = vector.load %arg7[%c0_18, %c0_19] : memref<8x128xf32, #tpu.memory_space<vmem>>, vector<8x128xf32>
      %c0_20 = arith.constant 0 : index
      %c0_21 = arith.constant 0 : index
      %c0_22 = arith.constant 0 : index
      %46 = vector.load %arg6[%c0_20, %c0_21, %c0_22] : memref<1x8x128xf32, #tpu.memory_space<vmem>>, vector<1x8x128xf32>
      %47 = vector.shape_cast %46 : vector<1x8x128xf32> to vector<8x128xf32>
      %48 = vector.shape_cast %45 : vector<8x128xf32> to vector<1x8x128xf32>
      tpu.vector_store %arg6[%c0_20, %c0_21, %c0_22], %48 {strides = array<i32>} : memref<1x8x128xf32, #tpu.memory_space<vmem>>, vector<1x8x128xf32>,
    } else {
    }
    return
  }
  func.func @transform_0(%arg0: i32, %arg1: i32) -> (i32, i32) {
    %c1_i32 = arith.constant 1 : i32
    %0 = arith.muli %arg0, %c1_i32 : i32
    %1 = arith.addi %0, %arg1 : i32
    %c0_i32 = arith.constant 0 : i32
    %2 = arith.minsi %1, %c0_i32 : i32
    %c0_i32_0 = arith.constant 0 : i32
    %c0_i32_1 = arith.constant 0 : i32
    return %2, %c0_i32_0 : i32, i32
  }
  func.func @transform_1(%arg0: i32, %arg1: i32) -> (i32, i32) {
    %c1_i32 = arith.constant 1 : i32
    %0 = arith.muli %arg0, %c1_i32 : i32
    %1 = arith.addi %0, %arg1 : i32
    %c0_i32 = arith.constant 0 : i32
    %2 = arith.minsi %1, %c0_i32 : i32
    %c0_i32_0 = arith.constant 0 : i32
    %c0_i32_1 = arith.constant 0 : i32
    return %2, %c0_i32_0 : i32, i32
  }
  func.func @transform_2(%arg0: i32, %arg1: i32) -> (i32, i32) {
    %c1_i32 = arith.constant 1 : i32
    %0 = arith.muli %arg0, %c1_i32 : i32
    %1 = arith.addi %0, %arg1 : i32
    %c0_i32 = arith.constant 0 : i32
    %2 = arith.minsi %1, %c0_i32 : i32
    %c0_i32_0 = arith.constant 0 : i32
    %c0_i32_1 = arith.constant 0 : i32
    return %2, %c0_i32_0 : i32, i32
  }
  func.func @transform_3(%arg0: i32, %arg1: i32) -> (i32, i32) {
    %c1_i32 = arith.constant 1 : i32
    %0 = arith.muli %arg0, %c1_i32 : i32
    %1 = arith.addi %0, %arg1 : i32
    %c0_i32 = arith.constant 0 : i32
    %2 = arith.minsi %1, %c0_i32 : i32
    %c0_i32_0 = arith.constant 0 : i32
    %c0_i32_1 = arith.constant 0 : i32
    return %2, %c0_i32_0 : i32, i32
  }
  func.func @transform_4(%arg0: i32, %arg1: i32) -> (i32, i32, i32) {
    %c0_i32 = arith.constant 0 : i32
    %c0_i32_0 = arith.constant 0 : i32
    %c0_i32_1 = arith.constant 0 : i32
    return %arg0, %c0_i32, %c0_i32_0 : i32, i32, i32
  }
}

</mosaic_0001>

<llo_original>
// kernel: tpu_custom_call.1
$region0: #{tpu_custom_call.1}
  #allocation0 [shape = 'u32[]', space=smem, size = 0x4, offset = 0x4, fixed_abs, tag = 'smem constant byte address 0x4 - core index']
  #allocation1 [shape = 'u32[144,128]{1,0:T(1,128)}', space=vmem, size = 0x12000, scoped, tag = 'internal scratch']
  #allocation2 [shape = 'f32[8,128]{1,0:T(8,128)}', space=vmem, size = 0x1000, scoped, tag = 'scratch operand']
  %s0 = inlined_call_operand.hbm [shape: f32[8,128], index: 0, kind: input, shape index: {}]
  %s1 = inlined_call_operand.hbm [shape: f32[8,128], index: 1, kind: input, shape index: {}]
  %s2 = inlined_call_operand.hbm [shape: f32[8,128], index: 2, kind: input, shape index: {}]
  %s3 = inlined_call_operand.vmem [shape: f32[8,128], index: 3, kind: input, shape index: {}]
  %s4 = inlined_call_operand.hbm [shape: f32[1,8,128], index: 4, kind: output, shape index: {}]
  %s5 = sld [smem:[#allocation0]]
  $region46: #{tpu_custom_call.1} parent=0
    _
  %s7 = ssub.s32 1, %s5
  %s8 = scalar_select 0, %s7, %s5
  $region1: #{tpu_custom_call.1} parent=0
    #allocation3 [shape = 'u8[4096]{0}', space=vmem, size = 0x1000, scoped, tag = 'input window, operand 0, single buffered']
    #allocation4 [shape = 's32[1]{0}', space=sflag, size = 0x4, scoped, tag = 'scoped memory for tpu_custom_call.1']
    #allocation5 [shape = 's32[1]{0}', space=sflag, size = 0x4, scoped, tag = 'scoped memory for tpu_custom_call.1']
    #allocation6 [shape = 'u8[4096]{0}', space=vmem, size = 0x1000, scoped, tag = 'input window, operand 1, single buffered']
    #allocation7 [shape = 's32[1]{0}', space=sflag, size = 0x4, scoped, tag = 'scoped memory for tpu_custom_call.1']
    #allocation8 [shape = 'u8[4096]{0}', space=vmem, size = 0x1000, scoped, tag = 'input window, operand 2, single buffered']
    #allocation9 [shape = 'u8[4096]{0}', space=vmem, size = 0x1000, scoped, tag = 'output window, operand 0, single buffered']
    %9 = vsyncpa [#allocation4], 0
    %10 = vsyncpa [#allocation7], 0
    %11 = vsyncpa [#allocation5], 0
    // Predicated region
    $region2: #{tpu_custom_call.1} parent=1 // pred_check
      _
    $region3: #{tpu_custom_call.1} parent=1 // pred_check_branch
      %13 = sbr.rel (0) target = $region5
    $region4: #{tpu_custom_call.1} parent=1 // pred_region
      %s14 = sadd.s32 0, 0
      %p15 = scmp.lt.s32.totalorder %s14, 0
      %s16 = scalar_select %p15, %s14, 0
      %s18 = ssub.s32 128, 128
      %19 = vsyncadd [#allocation4], %s18
      %s20 = smul.addr %s16, 128
      %s21 = scalar_lea.hbm %s0, %s20
      %s23 = sshll.u32 [#allocation3], 4
      %s24 = int_to_ptr.vmem [resolvable:$true] %s23
      %26 = dma.hbm_to_vmem [thread:$0]  %s21, 128, %s24, [#allocation4]
    $region5: #{tpu_custom_call.1} parent=1 // pred_fallthru
      _
    // Predicated region
    $region6: #{tpu_custom_call.1} parent=1 // pred_check
      _
    $region7: #{tpu_custom_call.1} parent=1 // pred_check_branch
      %28 = sbr.rel (0) target = $region9
    $region8: #{tpu_custom_call.1} parent=1 // pred_region
      %s29 = sadd.s32 0, 0
      %p30 = scmp.lt.s32.totalorder %s29, 0
      %s31 = scalar_select %p30, %s29, 0
      %s33 = ssub.s32 128, 128
      %34 = vsyncadd [#allocation7], %s33
      %s35 = smul.addr %s31, 128
      %s36 = scalar_lea.hbm %s1, %s35
      %s38 = sshll.u32 [#allocation6], 4
      %s39 = int_to_ptr.vmem [resolvable:$true] %s38
      %41 = dma.hbm_to_vmem [thread:$0]  %s36, 128, %s39, [#allocation7]
    $region9: #{tpu_custom_call.1} parent=1 // pred_fallthru
      _
    // Predicated region
    $region10: #{tpu_custom_call.1} parent=1 // pred_check
      _
    $region11: #{tpu_custom_call.1} parent=1 // pred_check_branch
      %43 = sbr.rel (0) target = $region13
    $region12: #{tpu_custom_call.1} parent=1 // pred_region
      %s44 = sadd.s32 0, 0
      %p45 = scmp.lt.s32.totalorder %s44, 0
      %s46 = scalar_select %p45, %s44, 0
      %s48 = ssub.s32 128, 128
      %49 = vsyncadd [#allocation7], %s48
      %s50 = smul.addr %s46, 128
      %s51 = scalar_lea.hbm %s2, %s50
      %s53 = sshll.u32 [#allocation8], 4
      %s54 = int_to_ptr.vmem [resolvable:$true] %s53
      %56 = dma.hbm_to_vmem [thread:$0]  %s51, 128, %s54, [#allocation7]
    $region13: #{tpu_custom_call.1} parent=1 // pred_fallthru
      _
    // Predicated region
    $region14: #{tpu_custom_call.1} parent=1 // pred_check
      _
    $region15: #{tpu_custom_call.1} parent=1 // pred_check_branch
      %58 = sbr.rel (0) target = $region17
    $region16: #{tpu_custom_call.1} parent=1 // pred_region
      %s59 = sadd.s32 0, 0
      %p60 = scmp.lt.s32.totalorder %s59, 0
      %s61 = scalar_select %p60, %s59, 0
      %p62 = scmp.lt.s32.totalorder %s61, 0
      %s63 = scalar_select %p62, %s61, 0
      %s64 = smul.addr %s63, 8
      %s65 = scalar_lea.vmem %s3, %s64
      %s66 = sadd.s32 0, 0
      %p67 = scmp.lt.s32.totalorder %s66, 0
      %s68 = scalar_select %p67, %s66, 0
    $region17: #{tpu_custom_call.1} parent=1 // pred_fallthru
      _
    // Predicated region
    $region18: #{tpu_custom_call.1} parent=1 // pred_check
      _
    $region19: #{tpu_custom_call.1} parent=1 // pred_check_branch
      %70 = sbr.rel (0) target = $region21
    $region20: #{tpu_custom_call.1} parent=1 // pred_region
      %71 = dma.done [#allocation4], 128
    $region21: #{tpu_custom_call.1} parent=1 // pred_fallthru
      _
    // Predicated region
    $region22: #{tpu_custom_call.1} parent=1 // pred_check
      _
    $region23: #{tpu_custom_call.1} parent=1 // pred_check_branch
      %73 = sbr.rel (0) target = $region25
    $region24: #{tpu_custom_call.1} parent=1 // pred_region
      %74 = dma.done [#allocation7], 128
    $region25: #{tpu_custom_call.1} parent=1 // pred_fallthru
      _
    // Predicated region
    $region26: #{tpu_custom_call.1} parent=1 // pred_check
      _
    $region27: #{tpu_custom_call.1} parent=1 // pred_check_branch
      %76 = sbr.rel (0) target = $region29
    $region28: #{tpu_custom_call.1} parent=1 // pred_region
      %77 = dma.done [#allocation7], 128
    $region29: #{tpu_custom_call.1} parent=1 // pred_fallthru
      _
    %s78 = sadd.s32 0, 0
    %p79 = scmp.lt.s32.totalorder %s78, 0
    %s80 = scalar_select %p79, %s78, 0
    %p81 = scmp.lt.s32.totalorder %s80, 0
    %s82 = scalar_select %p81, %s80, 0
    %s83 = smul.addr %s82, 8
    %s84 = scalar_lea.vmem %s3, %s83
    %s85 = sadd.s32 0, 0
    %p86 = scmp.lt.s32.totalorder %s85, 0
    %s87 = scalar_select %p86, %s85, 0
    %s88 = sadd.s32 0, 0
    %p89 = scmp.lt.s32.totalorder %s88, 0
    %s90 = scalar_select %p89, %s88, 0
    %s91 = sadd.s32 0, 0
    %p92 = scmp.lt.s32.totalorder %s91, 0
    %s93 = scalar_select %p92, %s91, 0
    %s94 = sadd.s32 0, 0
    %p95 = scmp.lt.s32.totalorder %s94, 0
    %s96 = scalar_select %p95, %s94, 0
    %p97 = scmp.lt.s32.totalorder %s96, 0
    %s98 = scalar_select %p97, %s96, 0
    %s99 = smul.addr %s98, 8
    %s100 = scalar_lea.vmem %s3, %s99
    %s101 = sadd.s32 0, 0
    %p102 = scmp.lt.s32.totalorder %s101, 0
    %s103 = scalar_select %p102, %s101, 0
    %p104 = scmp.eq.s32.totalorder 0, 0
    // Predicated region
    $region30: #{tpu_custom_call.1} parent=1 // pred_check
      %p105 = pneg %p104
    $region31: #{tpu_custom_call.1} parent=1 // pred_check_branch
      %107 = sbr.rel (%p105) target = $region33
    $region32: #{tpu_custom_call.1} parent=1 // pred_region
      %108 = vst [vmem:[#allocation2] sm:$0xff] 0.0
    $region33: #{tpu_custom_call.1} parent=1 // pred_fallthru
      _
    %v109 = vld [vmem:[#allocation3] sm:$0xff]
    %v110 = vld [vmem:[#allocation6] sm:$0xff]
    %v111 = vld [vmem:[#allocation8] sm:$0xff]
    %v112 = vld [vmem:[%s100] sm:$0xff]
    %v113 = vsub.f32 %v109, %v111
    %v114 = vsub.f32 %v110, %v112
    %v115 = vsub.f32 %v112, %v110
    %v116 = vmul.f32 %v115, 1.442695
    %v117 = vpow.pop %v116
    %v118 = vsub.f32 %v117, 1.0
    %v119 = vadd.f32 %v114, %v118
    %v120 = vmul.f32 %v113, %v113
    %v121 = vsub.f32 0.0, %v110
    %v122 = vmul.f32 %v121, 1.442695
    %v123 = vpow.pop %v122
    %v124 = vmul.f32 %v120, %v123
    %v125 = vadd.f32 %v119, %v124
    %v126 = vmul.f32 %v125, 0.5
    %s127 = sadd.s32 0, 0
    %s128 = smul.u32 %s127, 1024
    %v129 = vlaneseq
    %v130 = vshrl.u32 %v129, 7
    %v131 = vmul.u32 %v130, 128
    %v132 = vstv %s128
    %v133 = vadd.s32 %v132, %v131
    %v134 = vlaneseq
    %v135 = vand.u32 %v134, 127
    %v136 = vadd.s32 %v133, %v135
    %p137 = scmp.lt.s32.totalorder %s127, 1
    %vm138 = vcmp.lt.s32.totalorder %v136, 200
    %s139 = scalar_select %p137, 1, 0
    %v140 = vstv %s139
    %vm141 = vcmp.eq.s32.totalorder %v140, 1
    %vm142 = vmand %vm141, %vm138
    %v143 = vsel %vm142, %v126, 0.0
    %v144 = vld [vmem:[#allocation2] sm:$0xff]
    %v145 = vadd.f32 %v144, %v143
    %146 = vst [vmem:[#allocation2] sm:$0xff] %v145
    // Predicated region
    $region34: #{tpu_custom_call.1} parent=1 // pred_check
      %p147 = pneg %p104
    $region35: #{tpu_custom_call.1} parent=1 // pred_check_branch
      %149 = sbr.rel (%p147) target = $region37
    $region36: #{tpu_custom_call.1} parent=1 // pred_region
      %v150 = vld [vmem:[#allocation2] sm:$0xff]
      %151 = vst [vmem:[#allocation9] sm:$0xff] %v150
    $region37: #{tpu_custom_call.1} parent=1 // pred_fallthru
      _
    // Predicated region
    $region38: #{tpu_custom_call.1} parent=1 // pred_check
      _
    $region39: #{tpu_custom_call.1} parent=1 // pred_check_branch
      %153 = sbr.rel (0) target = $region41
    $region40: #{tpu_custom_call.1} parent=1 // pred_region
      %s155 = ssub.s32 128, 128
      %156 = vsyncadd [#allocation5], %s155
      %s158 = sshll.u32 [#allocation9], 4
      %s159 = int_to_ptr.vmem [resolvable:$true] %s158
      %161 = dma.vmem_to_hbm [thread:$0]  %s159, 128, %s4, [#allocation5]
    $region41: #{tpu_custom_call.1} parent=1 // pred_fallthru
      _
    // Predicated region
    $region42: #{tpu_custom_call.1} parent=1 // pred_check
      _
    $region43: #{tpu_custom_call.1} parent=1 // pred_check_branch
      %163 = sbr.rel (0) target = $region45
    $region44: #{tpu_custom_call.1} parent=1 // pred_region
      %164 = dma.done [#allocation5], 128
    $region45: #{tpu_custom_call.1} parent=1 // pred_fallthru
      _
    %165 = vsyncpa [#allocation4], 1
    %166 = vsyncpa [#allocation7], 1
    %167 = vsyncpa [#allocation5], 1

</llo_original>
